<compile_context>
chip_gen: v6e
topology: v6e:2x2x1
jax: 0.10.0
libtpu: 0.0.40
codegen_flags: <defaults>
</compile_context>

<pallas_src>
import functools

import jax
import jax.numpy as jnp
import numpy as np
from jax.experimental import pallas as pl
from jax.experimental.pallas import tpu as pltpu


def _round_up(v: int, m: int) -> int:
    return (v + m - 1) // m * m


def _fft_period_kernel(x_ref, basis_ref, periods_ref, amps_ref, *,
                       seq_len: int, num_freq: int, top_k: int):
    # x_ref:     [BT, S]       bf16 time-series tile (feature 0)
    # basis_ref: [S, 2*NFP]    bf16 [cos | sin] DFT basis, zero-padded freq columns
    # periods_ref, amps_ref: [BT, KP]  f32 lane-dense output slabs (KP = 128)
    nfp = basis_ref.shape[1] // 2

    # Single fused MXU pass, f32 accumulation.
    ri = jnp.dot(x_ref[...], basis_ref[...],
                 preferred_element_type=jnp.float32)          # [BT, 2*NFP]
    re = ri[:, :nfp]
    im = ri[:, nfp:]
    amp2 = re * re + im * im                                  # sqrt deferred to winners

    bt = amp2.shape[0]
    kp = periods_ref.shape[1]
    fidx = jax.lax.broadcasted_iota(jnp.int32, (bt, nfp), 1)
    # Mask padded frequency columns; real bins have amp2 >= 0, so -1 is never picked.
    work = jnp.where(fidx < num_freq, amp2, jnp.float32(-1.0))

    cidx = jax.lax.broadcasted_iota(jnp.int32, (bt, kp), 1)
    periods = jnp.zeros((bt, kp), jnp.float32)
    amps2_sel = jnp.zeros((bt, kp), jnp.float32)

    # Iterative top-k (K is small and static): max -> record -> mask out.
    for j in range(top_k):
        m = jnp.max(work, axis=1, keepdims=True)                      # [BT, 1]
        cand = jnp.where(work == m, fidx, jnp.int32(nfp))
        arg = jnp.min(cand, axis=1, keepdims=True)                    # lowest bin on ties
        per = jnp.float32(seq_len) / (arg.astype(jnp.float32) + 1.0)
        periods = jnp.where(cidx == j, per, periods)
        amps2_sel = jnp.where(cidx == j, m, amps2_sel)
        work = jnp.where(fidx == arg, -jnp.inf, work)

    periods_ref[...] = periods
    amps_ref[...] = jnp.sqrt(amps2_sel)     # KP-wide sqrt only (tiny vs NF-wide)


@functools.lru_cache(maxsize=8)
def _dft_basis(seq_len: int):
    """[S, 2*NFP] bf16 [cos | sin] basis for bins 1 .. S//2-1, lane-padded to 128."""
    nf = seq_len // 2 - 1
    nfp = max(_round_up(max(nf, 1), 128), 128)
    n = np.arange(seq_len, dtype=np.float64)[:, None]                 # [S, 1]
    k = np.arange(1, seq_len // 2, dtype=np.float64)[None, :]         # [1, NF]
    ang = 2.0 * np.pi * n * k / seq_len
    basis = np.zeros((seq_len, 2 * nfp), dtype=np.float32)
    if nf > 0:
        basis[:, :nf] = np.cos(ang)
        basis[:, nfp:nfp + nf] = np.sin(ang)
    return jnp.asarray(basis, dtype=jnp.bfloat16)                     # cached on device


@functools.partial(jax.jit, static_argnames=("top_k",))
def fft_period_discovery(x: jax.Array, top_k: int = 5):
    """Pallas equivalent of FFTPeriodDiscovery.forward.

    Args:
      x: [B, S, F] float array.
    Returns:
      periods:    [B, K] float32
      amplitudes: [B, K] float32
    where K = min(top_k, S//2 - 1).
    """
    B, S, _ = x.shape
    nf = S // 2 - 1
    k = min(top_k, nf)
    kp = max(_round_up(max(k, 1), 128), 128)

    basis = _dft_basis(S)                         # [S, 2*NFP] bf16, cached per S
    nfp = basis.shape[1] // 2

    x0 = x[:, :, 0].astype(jnp.bfloat16)          # [B, S]
    b_tile = 256 if B >= 256 else _round_up(B, 8)
    b_pad = _round_up(B, b_tile)
    if b_pad != B:
        x0 = jnp.pad(x0, ((0, b_pad - B), (0, 0)))

    grid = (b_pad // b_tile,)

    # VMEM budget: resident basis + double-buffered x/out tiles + f32 temporaries.
    est = (S * 2 * nfp * 2                 # basis (bf16, resident)
           + 2 * b_tile * S * 2            # x tile, double-buffered, bf16
           + 2 * 2 * b_tile * kp * 4       # two f32 output tiles, double-buffered
           + 6 * b_tile * nfp * 4)         # ri / amp2 / work / iota temporaries
    vmem_limit = None
    if est > 30 * 1024 * 1024:
        # TODO(synk): for very large S, tile the frequency axis with a running
        # top-k merge instead of just raising the VMEM limit.
        vmem_limit = min(int(est * 1.4), 48 * 1024 * 1024)

    kernel = functools.partial(_fft_period_kernel,
                               seq_len=S, num_freq=nf, top_k=k)

    periods_p, amps_p = pl.pallas_call(
        kernel,
        out_shape=(jax.ShapeDtypeStruct((b_pad, kp), jnp.float32),
                   jax.ShapeDtypeStruct((b_pad, kp), jnp.float32)),
        grid=grid,
        in_specs=[
            pl.BlockSpec((b_tile, S), lambda i: (i, 0)),
            pl.BlockSpec((S, 2 * nfp), lambda i: (0, 0)),   # resident across tiles
        ],
        out_specs=(
            pl.BlockSpec((b_tile, kp), lambda i: (i, 0)),
            pl.BlockSpec((b_tile, kp), lambda i: (i, 0)),
        ),
        compiler_params=pltpu.CompilerParams(
            dimension_semantics=("parallel",),
            vmem_limit_bytes=vmem_limit),
    )(x0, basis)

    return periods_p[:B, :k], amps_p[:B, :k]


if __name__ == "__main__":
    key = jax.random.PRNGKey(0)
    B, S, F = 2, 16, 4
    TOP_K = 5
    x = jax.random.normal(key, (B, S, F), dtype=jnp.float32)

    periods, amps = fft_period_discovery(x, top_k=TOP_K)
    jax.block_until_ready((periods, amps))
    periods = np.asarray(periods)
    amps = np.asarray(amps)

    # ---- Pure-JAX reference mirroring the PyTorch forward ----
    fft_result = jnp.fft.fft(x[:, :, 0].astype(jnp.float32))
    amp_full = np.asarray(jnp.abs(fft_result)[:, 1:S // 2])           # [B, NF]
    k = min(TOP_K, amp_full.shape[1])
    ref_amps, ref_idx = jax.lax.top_k(jnp.asarray(amp_full), k)
    ref_amps = np.asarray(ref_amps)
    ref_periods = (S / (np.asarray(ref_idx) + 1)).astype(np.float32)

    assert periods.shape == (B, k) and amps.shape == (B, k)

    # 1) periods map back to valid integer frequency bins: period = S / (bin + 1)
    bins = np.rint(S / periods).astype(np.int64) - 1
    assert np.all(np.abs(S / periods - (bins + 1)) < 1e-3)
    assert np.all((bins >= 0) & (bins < amp_full.shape[1]))

    # 2) amplitude reported for each selected bin matches the true spectrum there
    gathered = np.take_along_axis(amp_full, bins, axis=1)
    np.testing.assert_allclose(amps, gathered, rtol=3e-2, atol=5e-2)

    # 3) amplitudes are returned in descending order
    assert np.all(np.diff(amps, axis=1) <= 1e-5)

    # 4) selected amplitudes match the reference top-k set (tolerant to exact near-ties)
    np.testing.assert_allclose(np.sort(amps, axis=1), np.sort(ref_amps, axis=1),
                               rtol=3e-2, atol=5e-2)

    # 5) strict elementwise check whenever the spectrum has no bf16-scale near-ties
    gaps = np.diff(np.sort(amp_full, axis=1), axis=1)
    if gaps.size == 0 or gaps.min() > 0.1:
        np.testing.assert_allclose(periods, ref_periods, rtol=1e-3, atol=1e-3)
        np.testing.assert_allclose(amps, ref_amps, rtol=3e-2, atol=5e-2)

    print("KERNEL_OK")
</pallas_src>

<mosaic_0001>
module attributes {stable_mosaic.version = 11 : i64} {
  func.func @_fft_period_kernel(%arg0: i32, %arg1: memref<8x16xbf16, #tpu.memory_space<vmem>>, %arg2: memref<16x256xbf16, #tpu.memory_space<vmem>>, %arg3: memref<8x128xf32, #tpu.memory_space<vmem>>, %arg4: memref<8x128xf32, #tpu.memory_space<vmem>>) attributes {dimension_semantics = [#tpu.dimension_semantics<parallel>], iteration_bounds = array<i64: 1>, scalar_prefetch = 0 : i64, scratch_operands = 0 : i64, tpu.core_type = #tpu.core_type<tc>, window_params = [{transform_indices = @transform_0, window_bounds = array<i64: 8, 16>}, {pipeline_mode = #tpu.pipeline_mode<synchronous>, transform_indices = @transform_1, window_bounds = array<i64: 16, 256>}, {transform_indices = @transform_2, window_bounds = array<i64: 8, 128>}, {transform_indices = @transform_3, window_bounds = array<i64: 8, 128>}]} {
    %c0 = arith.constant 0 : index
    %c0_0 = arith.constant 0 : index
    %0 = vector.load %arg1[%c0, %c0_0] : memref<8x16xbf16, #tpu.memory_space<vmem>>, vector<8x16xbf16>
    %c0_1 = arith.constant 0 : index
    %c0_2 = arith.constant 0 : index
    %1 = vector.load %arg2[%c0_1, %c0_2] : memref<16x256xbf16, #tpu.memory_space<vmem>>, vector<16x256xbf16>
    %cst = arith.constant dense<0.000000e+00> : vector<8x256xf32>
    %2 = tpu.matmul %0, %1, %cst {dimension_numbers = #tpu.dot_dimension_numbers<[1], [0], [0], [1], [0, 0, 1, 1], [], []>} : vector<8x16xbf16>, vector<16x256xbf16>, vector<8x256xf32> -> vector<8x256xf32>
    %3 = vector.extract_strided_slice %2 {offsets = [0, 0], sizes = [8, 128], strides = [1, 1]} : vector<8x256xf32> to vector<8x128xf32>
    %4 = vector.extract_strided_slice %2 {offsets = [0, 128], sizes = [8, 128], strides = [1, 1]} : vector<8x256xf32> to vector<8x128xf32>
    %5 = arith.mulf %3, %3 : vector<8x128xf32>
    %6 = arith.mulf %4, %4 : vector<8x128xf32>
    %7 = arith.addf %5, %6 : vector<8x128xf32>
    %8 = tpu.iota {dimensions = array<i32: 1>} : vector<8x128xi32>
    %c7_i32 = arith.constant 7 : i32
    %9 = vector.broadcast %c7_i32 : i32 to vector<8x128xi32>
    %10 = arith.cmpi slt, %8, %9 : vector<8x128xi32>
    %cst_3 = arith.constant -1.000000e+00 : f32
    %11 = vector.broadcast %cst_3 : f32 to vector<8x128xf32>
    %12 = arith.select %10, %7, %11 : vector<8x128xi1>, vector<8x128xf32>
    %13 = tpu.iota {dimensions = array<i32: 1>} : vector<8x128xi32>
    %cst_4 = arith.constant 0.000000e+00 : f32
    %14 = vector.broadcast %cst_4 : f32 to vector<8x128xf32>
    %cst_5 = arith.constant 0.000000e+00 : f32
    %15 = vector.broadcast %cst_5 : f32 to vector<8x128xf32>
    %cst_6 = arith.constant dense<0xFF800000> : vector<8xf32>
    %16 = vector.multi_reduction <maximumf>, %12, %cst_6 [1] : vector<8x128xf32> to vector<8xf32>
    %17 = vector.shape_cast %16 : vector<8xf32> to vector<8x1xf32>
    %18 = vector.broadcast %17 : vector<8x1xf32> to vector<8x128xf32>
    %19 = arith.cmpf oeq, %12, %18 : vector<8x128xf32>
    %c128_i32 = arith.constant 128 : i32
    %20 = vector.broadcast %c128_i32 : i32 to vector<8x128xi32>
    %21 = arith.select %19, %8, %20 : vector<8x128xi1>, vector<8x128xi32>
    %cst_7 = arith.constant dense<2147483647> : vector<8xi32>
    %22 = vector.multi_reduction <minsi>, %21, %cst_7 [1] : vector<8x128xi32> to vector<8xi32>
    %23 = vector.shape_cast %22 : vector<8xi32> to vector<8x1xi32>
    %24 = arith.sitofp %23 : vector<8x1xi32> to vector<8x1xf32>
    %cst_8 = arith.constant 1.000000e+00 : f32
    %25 = vector.broadcast %cst_8 : f32 to vector<8x1xf32>
    %26 = arith.addf %24, %25 : vector<8x1xf32>
    %cst_9 = arith.constant 1.600000e+01 : f32
    %27 = vector.broadcast %cst_9 : f32 to vector<8x1xf32>
    %28 = arith.divf %27, %26 : vector<8x1xf32>
    %c0_i32 = arith.constant 0 : i32
    %29 = vector.broadcast %c0_i32 : i32 to vector<8x128xi32>
    %30 = arith.cmpi eq, %13, %29 : vector<8x128xi32>
    %31 = vector.shape_cast %28 : vector<8x1xf32> to vector<8x1xf32>
    %32 = vector.broadcast %31 : vector<8x1xf32> to vector<8x128xf32>
    %33 = arith.select %30, %32, %14 : vector<8x128xi1>, vector<8x128xf32>
    %c0_i32_10 = arith.constant 0 : i32
    %34 = vector.broadcast %c0_i32_10 : i32 to vector<8x128xi32>
    %35 = arith.cmpi eq, %13, %34 : vector<8x128xi32>
    %36 = vector.shape_cast %17 : vector<8x1xf32> to vector<8x1xf32>
    %37 = vector.broadcast %36 : vector<8x1xf32> to vector<8x128xf32>
    %38 = arith.select %35, %37, %15 : vector<8x128xi1>, vector<8x128xf32>
    %39 = vector.broadcast %23 : vector<8x1xi32> to vector<8x128xi32>
    %40 = arith.cmpi eq, %8, %39 : vector<8x128xi32>
    %cst_11 = arith.constant 0xFF800000 : f32
    %41 = vector.broadcast %cst_11 : f32 to vector<8x128xf32>
    %42 = arith.select %40, %41, %12 : vector<8x128xi1>, vector<8x128xf32>
    %cst_12 = arith.constant dense<0xFF800000> : vector<8xf32>
    %43 = vector.multi_reduction <maximumf>, %42, %cst_12 [1] : vector<8x128xf32> to vector<8xf32>
    %44 = vector.shape_cast %43 : vector<8xf32> to vector<8x1xf32>
    %45 = vector.broadcast %44 : vector<8x1xf32> to vector<8x128xf32>
    %46 = arith.cmpf oeq, %42, %45 : vector<8x128xf32>
    %c128_i32_13 = arith.constant 128 : i32
    %47 = vector.broadcast %c128_i32_13 : i32 to vector<8x128xi32>
    %48 = arith.select %46, %8, %47 : vector<8x128xi1>, vector<8x128xi32>
    %cst_14 = arith.constant dense<2147483647> : vector<8xi32>
    %49 = vector.multi_reduction <minsi>, %48, %cst_14 [1] : vector<8x128xi32> to vector<8xi32>
    %50 = vector.shape_cast %49 : vector<8xi32> to vector<8x1xi32>
    %51 = arith.sitofp %50 : vector<8x1xi32> to vector<8x1xf32>
    %cst_15 = arith.constant 1.000000e+00 : f32
    %52 = vector.broadcast %cst_15 : f32 to vector<8x1xf32>
    %53 = arith.addf %51, %52 : vector<8x1xf32>
    %cst_16 = arith.constant 1.600000e+01 : f32
    %54 = vector.broadcast %cst_16 : f32 to vector<8x1xf32>
    %55 = arith.divf %54, %53 : vector<8x1xf32>
    %c1_i32 = arith.constant 1 : i32
    %56 = vector.broadcast %c1_i32 : i32 to vector<8x128xi32>
    %57 = arith.cmpi eq, %13, %56 : vector<8x128xi32>
    %58 = vector.shape_cast %55 : vector<8x1xf32> to vector<8x1xf32>
    %59 = vector.broadcast %58 : vector<8x1xf32> to vector<8x128xf32>
    %60 = arith.select %57, %59, %33 : vector<8x128xi1>, vector<8x128xf32>
    %c1_i32_17 = arith.constant 1 : i32
    %61 = vector.broadcast %c1_i32_17 : i32 to vector<8x128xi32>
    %62 = arith.cmpi eq, %13, %61 : vector<8x128xi32>
    %63 = vector.shape_cast %44 : vector<8x1xf32> to vector<8x1xf32>
    %64 = vector.broadcast %63 : vector<8x1xf32> to vector<8x128xf32>
    %65 = arith.select %62, %64, %38 : vector<8x128xi1>, vector<8x128xf32>
    %66 = vector.broadcast %50 : vector<8x1xi32> to vector<8x128xi32>
    %67 = arith.cmpi eq, %8, %66 : vector<8x128xi32>
    %cst_18 = arith.constant 0xFF800000 : f32
    %68 = vector.broadcast %cst_18 : f32 to vector<8x128xf32>
    %69 = arith.select %67, %68, %42 : vector<8x128xi1>, vector<8x128xf32>
    %cst_19 = arith.constant dense<0xFF800000> : vector<8xf32>
    %70 = vector.multi_reduction <maximumf>, %69, %cst_19 [1] : vector<8x128xf32> to vector<8xf32>
    %71 = vector.shape_cast %70 : vector<8xf32> to vector<8x1xf32>
    %72 = vector.broadcast %71 : vector<8x1xf32> to vector<8x128xf32>
    %73 = arith.cmpf oeq, %69, %72 : vector<8x128xf32>
    %c128_i32_20 = arith.constant 128 : i32
    %74 = vector.broadcast %c128_i32_20 : i32 to vector<8x128xi32>
    %75 = arith.select %73, %8, %74 : vector<8x128xi1>, vector<8x128xi32>
    %cst_21 = arith.constant dense<2147483647> : vector<8xi32>
    %76 = vector.multi_reduction <minsi>, %75, %cst_21 [1] : vector<8x128xi32> to vector<8xi32>
    %77 = vector.shape_cast %76 : vector<8xi32> to vector<8x1xi32>
    %78 = arith.sitofp %77 : vector<8x1xi32> to vector<8x1xf32>
    %cst_22 = arith.constant 1.000000e+00 : f32
    %79 = vector.broadcast %cst_22 : f32 to vector<8x1xf32>
    %80 = arith.addf %78, %79 : vector<8x1xf32>
    %cst_23 = arith.constant 1.600000e+01 : f32
    %81 = vector.broadcast %cst_23 : f32 to vector<8x1xf32>
    %82 = arith.divf %81, %80 : vector<8x1xf32>
    %c2_i32 = arith.constant 2 : i32
    %83 = vector.broadcast %c2_i32 : i32 to vector<8x128xi32>
    %84 = arith.cmpi eq, %13, %83 : vector<8x128xi32>
    %85 = vector.shape_cast %82 : vector<8x1xf32> to vector<8x1xf32>
    %86 = vector.broadcast %85 : vector<8x1xf32> to vector<8x128xf32>
    %87 = arith.select %84, %86, %60 : vector<8x128xi1>, vector<8x128xf32>
    %c2_i32_24 = arith.constant 2 : i32
    %88 = vector.broadcast %c2_i32_24 : i32 to vector<8x128xi32>
    %89 = arith.cmpi eq, %13, %88 : vector<8x128xi32>
    %90 = vector.shape_cast %71 : vector<8x1xf32> to vector<8x1xf32>
    %91 = vector.broadcast %90 : vector<8x1xf32> to vector<8x128xf32>
    %92 = arith.select %89, %91, %65 : vector<8x128xi1>, vector<8x128xf32>
    %93 = vector.broadcast %77 : vector<8x1xi32> to vector<8x128xi32>
    %94 = arith.cmpi eq, %8, %93 : vector<8x128xi32>
    %cst_25 = arith.constant 0xFF800000 : f32
    %95 = vector.broadcast %cst_25 : f32 to vector<8x128xf32>
    %96 = arith.select %94, %95, %69 : vector<8x128xi1>, vector<8x128xf32>
    %cst_26 = arith.constant dense<0xFF800000> : vector<8xf32>
    %97 = vector.multi_reduction <maximumf>, %96, %cst_26 [1] : vector<8x128xf32> to vector<8xf32>
    %98 = vector.shape_cast %97 : vector<8xf32> to vector<8x1xf32>
    %99 = vector.broadcast %98 : vector<8x1xf32> to vector<8x128xf32>
    %100 = arith.cmpf oeq, %96, %99 : vector<8x128xf32>
    %c128_i32_27 = arith.constant 128 : i32
    %101 = vector.broadcast %c128_i32_27 : i32 to vector<8x128xi32>
    %102 = arith.select %100, %8, %101 : vector<8x128xi1>, vector<8x128xi32>
    %cst_28 = arith.constant dense<2147483647> : vector<8xi32>
    %103 = vector.multi_reduction <minsi>, %102, %cst_28 [1] : vector<8x128xi32> to vector<8xi32>
    %104 = vector.shape_cast %103 : vector<8xi32> to vector<8x1xi32>
    %105 = arith.sitofp %104 : vector<8x1xi32> to vector<8x1xf32>
    %cst_29 = arith.constant 1.000000e+00 : f32
    %106 = vector.broadcast %cst_29 : f32 to vector<8x1xf32>
    %107 = arith.addf %105, %106 : vector<8x1xf32>
    %cst_30 = arith.constant 1.600000e+01 : f32
    %108 = vector.broadcast %cst_30 : f32 to vector<8x1xf32>
    %109 = arith.divf %108, %107 : vector<8x1xf32>
    %c3_i32 = arith.constant 3 : i32
    %110 = vector.broadcast %c3_i32 : i32 to vector<8x128xi32>
    %111 = arith.cmpi eq, %13, %110 : vector<8x128xi32>
    %112 = vector.shape_cast %109 : vector<8x1xf32> to vector<8x1xf32>
    %113 = vector.broadcast %112 : vector<8x1xf32> to vector<8x128xf32>
    %114 = arith.select %111, %113, %87 : vector<8x128xi1>, vector<8x128xf32>
    %c3_i32_31 = arith.constant 3 : i32
    %115 = vector.broadcast %c3_i32_31 : i32 to vector<8x128xi32>
    %116 = arith.cmpi eq, %13, %115 : vector<8x128xi32>
    %117 = vector.shape_cast %98 : vector<8x1xf32> to vector<8x1xf32>
    %118 = vector.broadcast %117 : vector<8x1xf32> to vector<8x128xf32>
    %119 = arith.select %116, %118, %92 : vector<8x128xi1>, vector<8x128xf32>
    %120 = vector.broadcast %104 : vector<8x1xi32> to vector<8x128xi32>
    %121 = arith.cmpi eq, %8, %120 : vector<8x128xi32>
    %cst_32 = arith.constant 0xFF800000 : f32
    %122 = vector.broadcast %cst_32 : f32 to vector<8x128xf32>
    %123 = arith.select %121, %122, %96 : vector<8x128xi1>, vector<8x128xf32>
    %cst_33 = arith.constant dense<0xFF800000> : vector<8xf32>
    %124 = vector.multi_reduction <maximumf>, %123, %cst_33 [1] : vector<8x128xf32> to vector<8xf32>
    %125 = vector.shape_cast %124 : vector<8xf32> to vector<8x1xf32>
    %126 = vector.broadcast %125 : vector<8x1xf32> to vector<8x128xf32>
    %127 = arith.cmpf oeq, %123, %126 : vector<8x128xf32>
    %c128_i32_34 = arith.constant 128 : i32
    %128 = vector.broadcast %c128_i32_34 : i32 to vector<8x128xi32>
    %129 = arith.select %127, %8, %128 : vector<8x128xi1>, vector<8x128xi32>
    %cst_35 = arith.constant dense<2147483647> : vector<8xi32>
    %130 = vector.multi_reduction <minsi>, %129, %cst_35 [1] : vector<8x128xi32> to vector<8xi32>
    %131 = vector.shape_cast %130 : vector<8xi32> to vector<8x1xi32>
    %132 = arith.sitofp %131 : vector<8x1xi32> to vector<8x1xf32>
    %cst_36 = arith.constant 1.000000e+00 : f32
    %133 = vector.broadcast %cst_36 : f32 to vector<8x1xf32>
    %134 = arith.addf %132, %133 : vector<8x1xf32>
    %cst_37 = arith.constant 1.600000e+01 : f32
    %135 = vector.broadcast %cst_37 : f32 to vector<8x1xf32>
    %136 = arith.divf %135, %134 : vector<8x1xf32>
    %c4_i32 = arith.constant 4 : i32
    %137 = vector.broadcast %c4_i32 : i32 to vector<8x128xi32>
    %138 = arith.cmpi eq, %13, %137 : vector<8x128xi32>
    %139 = vector.shape_cast %136 : vector<8x1xf32> to vector<8x1xf32>
    %140 = vector.broadcast %139 : vector<8x1xf32> to vector<8x128xf32>
    %141 = arith.select %138, %140, %114 : vector<8x128xi1>, vector<8x128xf32>
    %c4_i32_38 = arith.constant 4 : i32
    %142 = vector.broadcast %c4_i32_38 : i32 to vector<8x128xi32>
    %143 = arith.cmpi eq, %13, %142 : vector<8x128xi32>
    %144 = vector.shape_cast %125 : vector<8x1xf32> to vector<8x1xf32>
    %145 = vector.broadcast %144 : vector<8x1xf32> to vector<8x128xf32>
    %146 = arith.select %143, %145, %119 : vector<8x128xi1>, vector<8x128xf32>
    %c0_39 = arith.constant 0 : index
    %c0_40 = arith.constant 0 : index
    %147 = vector.load %arg3[%c0_39, %c0_40] : memref<8x128xf32, #tpu.memory_space<vmem>>, vector<8x128xf32>
    tpu.vector_store %arg3[%c0_39, %c0_40], %141 {strides = array<i32>} : memref<8x128xf32, #tpu.memory_space<vmem>>, vector<8x128xf32>,
    %148 = math.sqrt %146 : vector<8x128xf32>
    %c0_41 = arith.constant 0 : index
    %c0_42 = arith.constant 0 : index
    %149 = vector.load %arg4[%c0_41, %c0_42] : memref<8x128xf32, #tpu.memory_space<vmem>>, vector<8x128xf32>
    tpu.vector_store %arg4[%c0_41, %c0_42], %148 {strides = array<i32>} : memref<8x128xf32, #tpu.memory_space<vmem>>, vector<8x128xf32>,
    return
  }
  func.func @transform_0(%arg0: i32) -> (i32, i32) {
    %c0_i32 = arith.constant 0 : i32
    %c0_i32_0 = arith.constant 0 : i32
    return %arg0, %c0_i32 : i32, i32
  }
  func.func @transform_1(%arg0: i32) -> (i32, i32) {
    %c0_i32 = arith.constant 0 : i32
    %c0_i32_0 = arith.constant 0 : i32
    %c0_i32_1 = arith.constant 0 : i32
    return %c0_i32, %c0_i32_0 : i32, i32
  }
  func.func @transform_2(%arg0: i32) -> (i32, i32) {
    %c0_i32 = arith.constant 0 : i32
    %c0_i32_0 = arith.constant 0 : i32
    return %arg0, %c0_i32 : i32, i32
  }
  func.func @transform_3(%arg0: i32) -> (i32, i32) {
    %c0_i32 = arith.constant 0 : i32
    %c0_i32_0 = arith.constant 0 : i32
    return %arg0, %c0_i32 : i32, i32
  }
}

</mosaic_0001>

<llo_original>
// kernel: fft_period_discovery.1
$region0: #{fft_period_discovery.1}
  #allocation0 [shape = 'u32[]', space=smem, size = 0x4, offset = 0x4, fixed_abs, tag = 'smem constant byte address 0x4 - core index']
  #allocation1 [shape = 'u32[144,128]{1,0:T(1,128)}', space=vmem, size = 0x12000, scoped, tag = 'internal scratch']
  %s0 = inlined_call_operand.vmem [shape: bf16[8,16], index: 0, kind: input, shape index: {}]
  %s1 = inlined_call_operand.hbm [shape: bf16[16,256], index: 1, kind: input, shape index: {}]
  %s2 = inlined_call_operand.vmem [shape: f32[8,128], index: 2, kind: output, shape index: {0}]
  %s3 = inlined_call_operand.vmem [shape: f32[8,128], index: 3, kind: output, shape index: {1}]
  %4 = xla_tuple %s2, %s3
  %s5 = sld [smem:[#allocation0]]
  $region30: #{fft_period_discovery.1} parent=0
    _
  %s7 = ssub.s32 1, %s5
  %s8 = scalar_select 0, %s7, %s5
  $region1: #{fft_period_discovery.1} parent=0
    #allocation2 [shape = 'u8[8192]{0}', space=vmem, size = 0x2000, scoped, tag = 'input window, operand 1, single buffered']
    #allocation3 [shape = 's32[1]{0}', space=sflag, size = 0x4, scoped, tag = 'scoped memory for fft_period_discovery.1']
    %9 = vsyncpa [#allocation3], 0
    // Predicated region
    $region2: #{fft_period_discovery.1} parent=1 // pred_check
      _
    $region3: #{fft_period_discovery.1} parent=1 // pred_check_branch
      %11 = sbr.rel (0) target = $region5
    $region4: #{fft_period_discovery.1} parent=1 // pred_region
      _
    $region5: #{fft_period_discovery.1} parent=1 // pred_fallthru
      _
    // Predicated region
    $region6: #{fft_period_discovery.1} parent=1 // pred_check
      _
    $region7: #{fft_period_discovery.1} parent=1 // pred_check_branch
      %13 = sbr.rel (0) target = $region9
    $region8: #{fft_period_discovery.1} parent=1 // pred_region
      %s15 = ssub.s32 256, 256
      %16 = vsyncadd [#allocation3], %s15
      %s17 = sshll.u32 [#allocation2], 4
      %s18 = int_to_ptr.vmem [resolvable:$true] %s17
      %23 = dma.hbm_to_vmem [thread:$0]  %s1, 256, %s18, [#allocation3], 128, 128, 8
    $region9: #{fft_period_discovery.1} parent=1 // pred_fallthru
      _
    // Predicated region
    $region10: #{fft_period_discovery.1} parent=1 // pred_check
      _
    $region11: #{fft_period_discovery.1} parent=1 // pred_check_branch
      %25 = sbr.rel (0) target = $region13
    $region12: #{fft_period_discovery.1} parent=1 // pred_region
      %26 = dma.done [#allocation3], 256
    $region13: #{fft_period_discovery.1} parent=1 // pred_fallthru
      _
    %v28 = vld [vmem:[%s0] sm:$0xf]
    %v29 = vld [vmem:[#allocation2] sm:$0xff]
    %v30 = vld [vmem:[#allocation2 + $0x8] sm:$0xff]
    %v33 = vunpack.c.l.b16 %v29
    %v34 = vunpack.c.h.b16 %v29
    %v35 = vunpack.c.l.b16 %v30
    %v36 = vunpack.c.h.b16 %v30
    %v37 = vpack.c.b16 %v35, %v33
    %v38 = vpack.c.b16 %v36, %v34
    %vm41 = vcmask 130048
    %v43 = vsel %vm41, %v28, 0
    %45 = vmatprep.subr.bf16.mxu0 0
    %46 = vmatpush1.bf16.msra.mxu0 0
    %47 = vmatprep.subr.bf16.mxu0 0
    %48 = vmatpush1.bf16.msra.mxu0 0
    %49 = vmatprep.subr.bf16.mxu0 0
    %50 = vmatpush1.bf16.msra.mxu0 0
    %51 = vmatprep.subr.bf16.mxu0 0
    %52 = vmatpush1.bf16.msra.mxu0 0
    %53 = vmatprep.subr.bf16.mxu0 0
    %54 = vmatpush1.bf16.msra.mxu0 0
    %55 = vmatprep.subr.bf16.mxu0 0
    %56 = vmatpush1.bf16.msra.mxu0 0
    %57 = vmatprep.subr.bf16.mxu0 0
    %58 = vmatpush1.bf16.msra.mxu0 0
    %59 = vmatprep.subr.bf16.mxu0 %v38
    %60 = vmatpush1.bf16.msra.mxu0 %v37
    %61 = vmatprep.subr.bf16.mxu0 0
    %62 = vmatpush2.bf16.msra.mxu0 0
    %63 = vmatprep.subr.bf16.mxu0 0
    %64 = vmatpush2.bf16.msra.mxu0 0
    %65 = vmatprep.subr.bf16.mxu0 0
    %66 = vmatpush2.bf16.msra.mxu0 0
    %67 = vmatprep.subr.bf16.mxu0 0
    %68 = vmatpush2.bf16.msra.mxu0 0
    %69 = vmatprep.subr.bf16.mxu0 0
    %70 = vmatpush2.bf16.msra.mxu0 0
    %71 = vmatprep.subr.bf16.mxu0 0
    %72 = vmatpush2.bf16.msra.mxu0 0
    %73 = vmatprep.subr.bf16.mxu0 0
    %74 = vmatpush2.bf16.msra.mxu0 0
    %75 = vmatprep.subr.bf16.mxu0 0
    %76 = vmatpush2.bf16.msra.mxu0 0
    %77 = vmatprep.mubr.bf16.mxu0 0
    %78 = vmatmul.mubr.bf16.gmra.mxu0 %v43
    %v79 = vpop.f32.mrf.mxu0
    %v80 = vadd.f32 0.0, %v79
    %v81 = vpop.f32.mrf.mxu0
    %v82 = vadd.f32 0.0, %v81
    %v83 = vpop.f32.mrf.mxu0
    %v84 = vpop.f32.mrf.mxu0
    %85 = vdwg.mxu0
    %v86 = vmul.f32 %v80, %v80
    %v87 = vmul.f32 %v82, %v82
    %v88 = vadd.f32 %v86, %v87
    %v89 = vlaneseq
    %v90 = vand.u32 %v89, 127
    %vm91 = vcmp.lt.s32.totalorder %v90, 7
    %v92 = vsel %vm91, %v88, -1.0
    %93 = vmax.xlane.f32.xlu0 %v92
    %v94 = vpop.xlane.xlu0 %93
    %vm95 = vcmp.eq.f32.partialorder %v92, %v94
    %v96 = vsel %vm95, %v90, 128
    %v97 = vand.u32 %v96, 65535
    %v98 = vshra.s32 %v96, 16
    %v99 = vcvt.s32.f32 %v97
    %v100 = vcvt.s32.f32 %v98
    %101 = vmin.xlane.f32.xlu0 %v100
    %v102 = vpop.xlane.xlu0 %101
    %vm103 = vcmp.eq.f32.partialorder %v100, %v102
    %v104 = vsel %vm103, %v99, inf
    %105 = vmin.xlane.f32.xlu0 %v104
    %v106 = vpop.xlane.xlu0 %105
    %v107 = vcvt.f32.s32 %v106
    %v108 = vcvt.f32.s32 %v102
    %v109 = vshll.u32 %v108, 16
    %v110 = vadd.s32 %v109, %v107
    %v111 = vcvt.s32.f32 %v110
    %v112 = vadd.f32 %v111, 1.0
    %v113 = vrcp.pop %v112
    %v114 = vmul.f32 16.0, %v113
    %vm115 = vcmp.eq.s32.totalorder %v90, 0
    %v116 = vsel %vm115, %v114, 0.0
    %v117 = vsel %vm115, %v94, 0.0
    %vm118 = vcmp.eq.s32.totalorder %v90, %v110
    %v119 = vsel %vm118, -inf, %v92
    %120 = vmax.xlane.f32.xlu0 %v119
    %v121 = vpop.xlane.xlu0 %120
    %vm122 = vcmp.eq.f32.partialorder %v119, %v121
    %v123 = vsel %vm122, %v90, 128
    %v124 = vand.u32 %v123, 65535
    %v125 = vshra.s32 %v123, 16
    %v126 = vcvt.s32.f32 %v124
    %v127 = vcvt.s32.f32 %v125
    %128 = vmin.xlane.f32.xlu0 %v127
    %v129 = vpop.xlane.xlu0 %128
    %vm130 = vcmp.eq.f32.partialorder %v127, %v129
    %v131 = vsel %vm130, %v126, inf
    %132 = vmin.xlane.f32.xlu0 %v131
    %v133 = vpop.xlane.xlu0 %132
    %v134 = vcvt.f32.s32 %v133
    %v135 = vcvt.f32.s32 %v129
    %v136 = vshll.u32 %v135, 16
    %v137 = vadd.s32 %v136, %v134
    %v138 = vcvt.s32.f32 %v137
    %v139 = vadd.f32 %v138, 1.0
    %v140 = vrcp.pop %v139
    %v141 = vmul.f32 16.0, %v140
    %vm142 = vcmp.eq.s32.totalorder %v90, 1
    %v143 = vsel %vm142, %v141, %v116
    %v144 = vsel %vm142, %v121, %v117
    %vm145 = vcmp.eq.s32.totalorder %v90, %v137
    %v146 = vsel %vm145, -inf, %v119
    %147 = vmax.xlane.f32.xlu0 %v146
    %v148 = vpop.xlane.xlu0 %147
    %vm149 = vcmp.eq.f32.partialorder %v146, %v148
    %v150 = vsel %vm149, %v90, 128
    %v151 = vand.u32 %v150, 65535
    %v152 = vshra.s32 %v150, 16
    %v153 = vcvt.s32.f32 %v151
    %v154 = vcvt.s32.f32 %v152
    %155 = vmin.xlane.f32.xlu0 %v154
    %v156 = vpop.xlane.xlu0 %155
    %vm157 = vcmp.eq.f32.partialorder %v154, %v156
    %v158 = vsel %vm157, %v153, inf
    %159 = vmin.xlane.f32.xlu0 %v158
    %v160 = vpop.xlane.xlu0 %159
    %v161 = vcvt.f32.s32 %v160
    %v162 = vcvt.f32.s32 %v156
    %v163 = vshll.u32 %v162, 16
    %v164 = vadd.s32 %v163, %v161
    %v165 = vcvt.s32.f32 %v164
    %v166 = vadd.f32 %v165, 1.0
    %v167 = vrcp.pop %v166
    %v168 = vmul.f32 16.0, %v167
    %vm169 = vcmp.eq.s32.totalorder %v90, 2
    %v170 = vsel %vm169, %v168, %v143
    %v171 = vsel %vm169, %v148, %v144
    %vm172 = vcmp.eq.s32.totalorder %v90, %v164
    %v173 = vsel %vm172, -inf, %v146
    %174 = vmax.xlane.f32.xlu0 %v173
    %v175 = vpop.xlane.xlu0 %174
    %vm176 = vcmp.eq.f32.partialorder %v173, %v175
    %v177 = vsel %vm176, %v90, 128
    %v178 = vand.u32 %v177, 65535
    %v179 = vshra.s32 %v177, 16
    %v180 = vcvt.s32.f32 %v178
    %v181 = vcvt.s32.f32 %v179
    %182 = vmin.xlane.f32.xlu0 %v181
    %v183 = vpop.xlane.xlu0 %182
    %vm184 = vcmp.eq.f32.partialorder %v181, %v183
    %v185 = vsel %vm184, %v180, inf
    %186 = vmin.xlane.f32.xlu0 %v185
    %v187 = vpop.xlane.xlu0 %186
    %v188 = vcvt.f32.s32 %v187
    %v189 = vcvt.f32.s32 %v183
    %v190 = vshll.u32 %v189, 16
    %v191 = vadd.s32 %v190, %v188
    %v192 = vcvt.s32.f32 %v191
    %v193 = vadd.f32 %v192, 1.0
    %v194 = vrcp.pop %v193
    %v195 = vmul.f32 16.0, %v194
    %vm196 = vcmp.eq.s32.totalorder %v90, 3
    %v197 = vsel %vm196, %v195, %v170
    %v198 = vsel %vm196, %v175, %v171
    %vm199 = vcmp.eq.s32.totalorder %v90, %v191
    %v200 = vsel %vm199, -inf, %v173
    %201 = vmax.xlane.f32.xlu0 %v200
    %v202 = vpop.xlane.xlu0 %201
    %vm203 = vcmp.eq.f32.partialorder %v200, %v202
    %v204 = vsel %vm203, %v90, 128
    %v205 = vand.u32 %v204, 65535
    %v206 = vshra.s32 %v204, 16
    %v207 = vcvt.s32.f32 %v205
    %v208 = vcvt.s32.f32 %v206
    %209 = vmin.xlane.f32.xlu0 %v208
    %v210 = vpop.xlane.xlu0 %209
    %vm211 = vcmp.eq.f32.partialorder %v208, %v210
    %v212 = vsel %vm211, %v207, inf
    %213 = vmin.xlane.f32.xlu0 %v212
    %v214 = vpop.xlane.xlu0 %213
    %v215 = vcvt.f32.s32 %v214
    %v216 = vcvt.f32.s32 %v210
    %v217 = vshll.u32 %v216, 16
    %v218 = vadd.s32 %v217, %v215
    %v219 = vcvt.s32.f32 %v218
    %v220 = vadd.f32 %v219, 1.0
    %v221 = vrcp.pop %v220
    %v222 = vmul.f32 16.0, %v221
    %vm223 = vcmp.eq.s32.totalorder %v90, 4
    %v224 = vsel %vm223, %v222, %v197
    %v225 = vsel %vm223, %v202, %v198
    %226 = vst [vmem:[%s2] sm:$0xff] %v224
    %v227 = vrsqrt.pop %v225
    %v228 = vmul.f32 %v225, %v227
    %vm229 = vcmp.eq.f32.partialorder %v225, inf
    %v230 = vsel %vm229, %v225, %v228
    %vm231 = vcmp.eq.f32.partialorder %v225, 0.0
    %v232 = vand.u32 %v225, 2147483648
    %v233 = vsel %vm231, %v232, %v230
    %234 = vst [vmem:[%s3] sm:$0xff] %v233
    // Predicated region
    $region14: #{fft_period_discovery.1} parent=1 // pred_check
      _
    $region15: #{fft_period_discovery.1} parent=1 // pred_check_branch
      %236 = sbr.rel (0) target = $region17
    $region16: #{fft_period_discovery.1} parent=1 // pred_region
      _
    $region17: #{fft_period_discovery.1} parent=1 // pred_fallthru
      _
    // Predicated region
    $region18: #{fft_period_discovery.1} parent=1 // pred_check
      _
    $region19: #{fft_period_discovery.1} parent=1 // pred_check_branch
      %238 = sbr.rel (0) target = $region21
    $region20: #{fft_period_discovery.1} parent=1 // pred_region
      _
    $region21: #{fft_period_discovery.1} parent=1 // pred_fallthru
      _
    // Predicated region
    $region22: #{fft_period_discovery.1} parent=1 // pred_check
      _
    $region23: #{fft_period_discovery.1} parent=1 // pred_check_branch
      %240 = sbr.rel (0) target = $region25
    $region24: #{fft_period_discovery.1} parent=1 // pred_region
      _
    $region25: #{fft_period_discovery.1} parent=1 // pred_fallthru
      _
    // Predicated region
    $region26: #{fft_period_discovery.1} parent=1 // pred_check
      _
    $region27: #{fft_period_discovery.1} parent=1 // pred_check_branch
      %242 = sbr.rel (0) target = $region29
    $region28: #{fft_period_discovery.1} parent=1 // pred_region
      _
    $region29: #{fft_period_discovery.1} parent=1 // pred_fallthru
      _
    %243 = vsyncpa [#allocation3], 1

</llo_original>
